<compile_context>
chip_gen: v6e
topology: v6e:2x2x1
jax: 0.10.0
libtpu: 0.0.40
codegen_flags: <defaults>
</compile_context>

<pallas_src>
import numpy as np
import jax
import jax.numpy as jnp
from jax import lax
from jax.experimental import pallas as pl
from jax.experimental.pallas import tpu as pltpu

EPS = 1e-12
ENTROPY_LOSS_WEIGHT = 0.0002

LANES = 128
SUBLANES = 8
MAX_TILE_ROWS = 2048                  # (2048,128) f32 tile = 1 MiB / input / buffer
VMEM_LIMIT_BYTES = 32 * 1024 * 1024   # >= 4 streams x 2 bufs x 1 MiB on every gen


def _cdiv(a, b):
    return -(-a // b)


def _num_core_splits():
    """2 only on 2-TensorCore (v7x-class) chips, where the leading 'parallel'
    grid axis shards the row range across cores.  On 1-TC chips (v5e/v6e) a
    second split is pure overhead, so keep it at 1."""
    try:
        kind = jax.devices()[0].device_kind.lower()
    except Exception:
        return 1
    return 2 if ("v7" in kind or "tpu7" in kind) else 1


def _split_main_tail(x):
    """View x as a kernel-friendly (rows, 128) slab plus a tiny JAX-side tail.

    * numel % 128 == 0 -> pure reshape, zero copies (the common NCHW case).
    * otherwise        -> the < 128-element lane tail is summed in plain JAX
                          (the prefix slice is the only copy; rare case).
    * rows < 8         -> whole (tiny) tensor handled in plain JAX.
    Rows need NOT be a multiple of 8: the ragged boundary tile is masked
    in-kernel, so no zero-padding (full-tensor pad copy) is ever needed.
    """
    flat = x.reshape(-1)
    n = flat.shape[0]
    rows = n // LANES
    if rows < SUBLANES:
        return None, flat
    main = rows * LANES
    if main == n:
        return flat.reshape(rows, LANES), None
    return flat[:main].reshape(rows, LANES), flat[main:]


def _tail_sum(fn, *tails):
    if tails[0] is None:
        return jnp.float32(0.0)
    vals = [t.astype(jnp.float32) for t in tails]
    return jnp.sum(fn(*vals))


def _emit_term(out_ref, term_refs, t, total_steps, m):
    """Emit the accumulation code for one loss term at grid step t (traced)."""
    tr, tiles, idx = m["tile_rows"], m["tiles"], m["out_idx"]
    valid_last, fn = m["valid_last"], m["fn"]

    def accumulate(n_valid):
        vals = [r[...].astype(jnp.float32) for r in term_refs]
        contrib = fn(*vals)
        if n_valid != tr:
            # Boundary tile only: rows past the array end hold DMA garbage
            # (possibly NaN/Inf) -> true select, never multiply-by-mask.
            rid = lax.broadcasted_iota(jnp.int32, (tr, LANES), 0)
            contrib = jnp.where(rid < n_valid, contrib, 0.0)
        # Fold the tile into this term's resident (8,128) accumulator row of
        # the output block: pure VPU vreg adds, no per-step cross-lane reduce.
        out_ref[idx] += contrib.reshape(tr // SUBLANES, SUBLANES, LANES).sum(axis=0)

    if valid_last == tr:                       # no ragged boundary tile
        if tiles == total_steps:
            accumulate(tr)                     # stream spans every grid step
        else:
            pl.when(t < tiles)(lambda: accumulate(tr))
    else:
        if tiles > 1:
            pl.when(t < tiles - 1)(lambda: accumulate(tr))
        pl.when(t == tiles - 1)(lambda: accumulate(valid_last))


def _fused_sums(terms):
    """terms: list of {fn, mains=(slab,...)} where slab is (rows,128) or None.
    Returns a length-3 f32 vector with sum(fn(*mains)) per term (0 for terms
    whose main slab is empty)."""
    num_splits = _num_core_splits()

    metas, active_terms = [], []
    for out_idx, term in enumerate(terms):
        if term["mains"][0] is None:
            continue
        rows = term["mains"][0].shape[0]
        tile_rows = min(MAX_TILE_ROWS, (rows // SUBLANES) * SUBLANES)
        tiles = _cdiv(rows, tile_rows)
        metas.append(dict(out_idx=out_idx, fn=term["fn"], n_refs=len(term["mains"]),
                          rows=rows, tile_rows=tile_rows, tiles=tiles,
                          valid_last=rows - (tiles - 1) * tile_rows))
        active_terms.append(term)
    if not metas:
        return jnp.zeros((3,), jnp.float32)

    total_tiles = max(m["tiles"] for m in metas)
    tiles_per_split = _cdiv(total_tiles, num_splits)
    total_steps = num_splits * tiles_per_split

    def make_index_map(tiles):
        def index_map(c, i):
            # Clamp so the DMA start never leaves the array; once a stream is
            # exhausted its block index stops changing, so Pallas issues no
            # further DMAs for it (no redundant HBM traffic from the fusion).
            return (jnp.minimum(c * tiles_per_split + i, tiles - 1), 0)
        return index_map

    flat_args, in_specs = [], []
    for term, m in zip(active_terms, metas):
        imap = make_index_map(m["tiles"])
        for arr in term["mains"]:
            flat_args.append(arr)
            in_specs.append(pl.BlockSpec((m["tile_rows"], LANES), imap))

    def kernel(*refs):
        in_refs, out_ref = refs[:-1], refs[-1]
        c = pl.program_id(0)               # core split (parallel)
        i = pl.program_id(1)               # row-tile step (reduction axis)
        t = c * tiles_per_split + i        # logical global tile step

        @pl.when(i == 0)
        def _():
            out_ref[...] = jnp.zeros_like(out_ref)

        pos = 0
        for m in metas:
            term_refs = in_refs[pos:pos + m["n_refs"]]
            pos += m["n_refs"]
            _emit_term(out_ref, term_refs, t, total_steps, m)

    out_spec = pl.BlockSpec((None, 3, SUBLANES, LANES), lambda c, i: (c, 0, 0, 0))

    partials = pl.pallas_call(
        kernel,
        out_shape=jax.ShapeDtypeStruct((num_splits, 3, SUBLANES, LANES), jnp.float32),
        grid_spec=pltpu.PrefetchScalarGridSpec(
            num_scalar_prefetch=0,
            grid=(num_splits, tiles_per_split),
            in_specs=in_specs,
            out_specs=out_spec),
        compiler_params=pltpu.CompilerParams(
            dimension_semantics=("parallel", "arbitrary"),
            vmem_limit_bytes=VMEM_LIMIT_BYTES),
    )(*flat_args)

    # Tiny (num_splits,3,8,128) lane-dense writeback; final reduce fuses in XLA.
    return jnp.sum(partials, axis=(0, 2, 3))


def _memae_loss(net_in, x_hat, att, z, beta=0.0, grad_pen_weight=0.0):
    """MemAELoss.forward(net_in, {'x_hat','att','z'}) default path.

    Returns (loss, recon_mean, entro_loss, embedding_loss, grad_penalty).
    entro_loss assumes att dim 1 is the memory-slot dim (feature_map_permute).
    """
    recon_fn = lambda a, b: (a - b) * (a - b)
    ent_fn = lambda a: a * jnp.log(a + EPS)
    sq_fn = lambda a: a * a

    x_main, x_tail = _split_main_tail(net_in)
    xh_main, xh_tail = _split_main_tail(x_hat)
    a_main, a_tail = _split_main_tail(att)
    z_main, z_tail = _split_main_tail(z)

    sums = _fused_sums([
        dict(fn=recon_fn, mains=(x_main, xh_main)),
        dict(fn=ent_fn, mains=(a_main,)),
        dict(fn=sq_fn, mains=(z_main,)),
    ])
    recon_sum = sums[0] + _tail_sum(recon_fn, x_tail, xh_tail)
    ent_sum = sums[1] + _tail_sum(ent_fn, a_tail)
    zsq_sum = sums[2] + _tail_sum(sq_fn, z_tail)

    n_x = float(np.prod(net_in.shape))
    n_att = float(np.prod(att.shape))
    m_att = float(att.shape[1])   # memory-slot dim; moved last by feature_map_permute
    n_z = float(np.prod(z.shape))

    recon_mean = recon_sum / n_x
    # entropy_loss: (-x*log(x+eps)).sum(dim=1).mean() over rows of shape (-1, M)
    entro_loss = -ent_sum * (m_att / n_att)
    embedding_loss = beta * (zsq_sum / n_z)
    # TODO(synk): grad_pen_loss needs the autograd graph of x_hat w.r.t. z
    # (the decoder), which is not recoverable from the forward tensors alone.
    grad_penalty = jnp.float32(0.0) * grad_pen_weight

    loss = recon_mean + ENTROPY_LOSS_WEIGHT * entro_loss + grad_penalty + embedding_loss
    return loss, recon_mean, entro_loss, embedding_loss, grad_penalty


memae_loss = jax.jit(_memae_loss)


def _reference(net_in, x_hat, att, z, beta=0.0):
    recon = jnp.mean((net_in - x_hat) ** 2)
    a = jnp.moveaxis(att, 1, -1).reshape(-1, att.shape[1])
    entro = jnp.mean(-jnp.sum(a * jnp.log(a + EPS), axis=1))
    emb = beta * jnp.mean(z ** 2)
    loss = recon + ENTROPY_LOSS_WEIGHT * entro + emb
    return loss, recon, entro, emb


def _check(net_in, x_hat, att, z, beta):
    loss, recon_mean, entro_loss, embedding_loss, grad_penalty = memae_loss(
        net_in, x_hat, att, z, beta, 0.0)
    jax.block_until_ready(loss)
    ref_loss, ref_recon, ref_entro, ref_emb = _reference(net_in, x_hat, att, z, beta)
    np.testing.assert_allclose(np.asarray(loss), np.asarray(ref_loss), rtol=1e-5, atol=1e-6)
    np.testing.assert_allclose(np.asarray(recon_mean), np.asarray(ref_recon), rtol=1e-5, atol=1e-6)
    np.testing.assert_allclose(np.asarray(entro_loss), np.asarray(ref_entro), rtol=1e-5, atol=1e-6)
    np.testing.assert_allclose(np.asarray(embedding_loss), np.asarray(ref_emb), rtol=1e-5, atol=1e-6)


if __name__ == "__main__":
    key = jax.random.PRNGKey(0)
    k1, k2, k3, k4, k5, k6, k7, k8 = jax.random.split(key, 8)

    # Config 1: lane-aligned NCHW activations (pure-reshape slabs), unequal
    # stream lengths in the fused kernel, ragged sub-tile boundary on z.
    net_in = jax.random.normal(k1, (2, 4, 16, 16), dtype=jnp.float32)
    x_hat = jax.random.normal(k2, (2, 4, 16, 16), dtype=jnp.float32)
    att = jax.nn.softmax(jax.random.normal(k3, (2, 8, 16, 16), dtype=jnp.float32), axis=1)
    z = jax.random.normal(k4, (2, 16, 6, 6), dtype=jnp.float32)
    _check(net_in, x_hat, att, z, beta=0.001)

    # Config 2: element counts that are not multiples of 128 (JAX lane tails)
    # and a z stream too small for the kernel (handled fully in plain JAX).
    net_in2 = jax.random.normal(k5, (2, 3, 14, 14), dtype=jnp.float32)
    x_hat2 = jax.random.normal(k6, (2, 3, 14, 14), dtype=jnp.float32)
    att2 = jax.nn.softmax(jax.random.normal(k7, (2, 6, 14, 14), dtype=jnp.float32), axis=1)
    z2 = jax.random.normal(k8, (2, 8, 5, 5), dtype=jnp.float32)
    _check(net_in2, x_hat2, att2, z2, beta=0.001)

    print("KERNEL_OK")
</pallas_src>

<mosaic_0001>
module attributes {stable_mosaic.version = 11 : i64} {
  func.func @kernel(%arg0: i32, %arg1: i32, %arg2: memref<16x128xf32, #tpu.memory_space<vmem>>, %arg3: memref<16x128xf32, #tpu.memory_space<vmem>>, %arg4: memref<32x128xf32, #tpu.memory_space<vmem>>, %arg5: memref<8x128xf32, #tpu.memory_space<vmem>>, %arg6: memref<1x3x8x128xf32, #tpu.memory_space<vmem>>) attributes {dimension_semantics = [#tpu.dimension_semantics<parallel>, #tpu.dimension_semantics<arbitrary>], iteration_bounds = array<i64: 1, 2>, scalar_prefetch = 0 : i64, scratch_operands = 0 : i64, tpu.core_type = #tpu.core_type<tc>, window_params = [{transform_indices = @transform_0, window_bounds = array<i64: 16, 128>}, {transform_indices = @transform_1, window_bounds = array<i64: 16, 128>}, {transform_indices = @transform_2, window_bounds = array<i64: 32, 128>}, {transform_indices = @transform_3, window_bounds = array<i64: 8, 128>}, {transform_indices = @transform_4, window_bounds = array<i64: 1, 3, 8, 128>}]} {
    %c2_i32 = arith.constant 2 : i32
    %0 = arith.muli %arg0, %c2_i32 : i32
    %1 = arith.addi %0, %arg1 : i32
    %c0_i32 = arith.constant 0 : i32
    %2 = arith.cmpi eq, %arg1, %c0_i32 : i32
    %3 = arith.extui %2 : i1 to i32
    %c0_i32_0 = arith.constant 0 : i32
    %4 = arith.cmpi ne, %3, %c0_i32_0 : i32
    scf.if %4 {
      %cst = arith.constant 0.000000e+00 : f32
      %17 = vector.broadcast %cst : f32 to vector<3x8x128xf32>
      %c0 = arith.constant 0 : index
      %c0_8 = arith.constant 0 : index
      %c0_9 = arith.constant 0 : index
      %c0_10 = arith.constant 0 : index
      %18 = vector.load %arg6[%c0, %c0_8, %c0_9, %c0_10] : memref<1x3x8x128xf32, #tpu.memory_space<vmem>>, vector<1x3x8x128xf32>
      %19 = vector.shape_cast %18 : vector<1x3x8x128xf32> to vector<3x8x128xf32>
      %20 = vector.shape_cast %17 : vector<3x8x128xf32> to vector<1x3x8x128xf32>
      tpu.vector_store %arg6[%c0, %c0_8, %c0_9, %c0_10], %20 {strides = array<i32>} : memref<1x3x8x128xf32, #tpu.memory_space<vmem>>, vector<1x3x8x128xf32>,
    } else {
    }
    %c1_i32 = arith.constant 1 : i32
    %5 = arith.cmpi slt, %1, %c1_i32 : i32
    %6 = arith.extui %5 : i1 to i32
    %c0_i32_1 = arith.constant 0 : i32
    %7 = arith.cmpi ne, %6, %c0_i32_1 : i32
    scf.if %7 {
      %c0 = arith.constant 0 : index
      %c0_8 = arith.constant 0 : index
      %17 = vector.load %arg2[%c0, %c0_8] : memref<16x128xf32, #tpu.memory_space<vmem>>, vector<16x128xf32>
      %c0_9 = arith.constant 0 : index
      %c0_10 = arith.constant 0 : index
      %18 = vector.load %arg3[%c0_9, %c0_10] : memref<16x128xf32, #tpu.memory_space<vmem>>, vector<16x128xf32>
      %19 = arith.subf %17, %18 : vector<16x128xf32>
      %20 = arith.subf %17, %18 : vector<16x128xf32>
      %21 = arith.mulf %19, %20 : vector<16x128xf32>
      %c0_11 = arith.constant 0 : index
      %c0_12 = arith.constant 0 : index
      %c0_13 = arith.constant 0 : index
      %c0_14 = arith.constant 0 : index
      %22 = vector.load %arg6[%c0_11, %c0_12, %c0_13, %c0_14] : memref<1x3x8x128xf32, #tpu.memory_space<vmem>>, vector<1x1x8x128xf32>
      %23 = vector.shape_cast %22 : vector<1x1x8x128xf32> to vector<8x128xf32>
      %24 = vector.shape_cast %21 : vector<16x128xf32> to vector<2x8x128xf32>
      %cst = arith.constant dense<0.000000e+00> : vector<8x128xf32>
      %25 = vector.multi_reduction <add>, %24, %cst [0] : vector<2x8x128xf32> to vector<8x128xf32>
      %26 = arith.addf %23, %25 : vector<8x128xf32>
      %c0_15 = arith.constant 0 : index
      %c0_16 = arith.constant 0 : index
      %c0_17 = arith.constant 0 : index
      %c0_18 = arith.constant 0 : index
      %27 = vector.load %arg6[%c0_15, %c0_16, %c0_17, %c0_18] : memref<1x3x8x128xf32, #tpu.memory_space<vmem>>, vector<1x1x8x128xf32>
      %28 = vector.shape_cast %27 : vector<1x1x8x128xf32> to vector<8x128xf32>
      %29 = vector.shape_cast %26 : vector<8x128xf32> to vector<1x1x8x128xf32>
      tpu.vector_store %arg6[%c0_15, %c0_16, %c0_17, %c0_18], %29 {strides = array<i32>} : memref<1x3x8x128xf32, #tpu.memory_space<vmem>>, vector<1x1x8x128xf32>,
    } else {
    }
    %c1_i32_2 = arith.constant 1 : i32
    %8 = arith.cmpi slt, %1, %c1_i32_2 : i32
    %9 = arith.extui %8 : i1 to i32
    %c0_i32_3 = arith.constant 0 : i32
    %10 = arith.cmpi ne, %9, %c0_i32_3 : i32
    scf.if %10 {
      %c0 = arith.constant 0 : index
      %c0_8 = arith.constant 0 : index
      %17 = vector.load %arg4[%c0, %c0_8] : memref<32x128xf32, #tpu.memory_space<vmem>>, vector<32x128xf32>
      %cst = arith.constant 9.99999996E-13 : f32
      %18 = vector.broadcast %cst : f32 to vector<32x128xf32>
      %19 = arith.addf %17, %18 : vector<32x128xf32>
      %20 = math.log %19 : vector<32x128xf32>
      %21 = arith.mulf %17, %20 : vector<32x128xf32>
      %c0_9 = arith.constant 0 : index
      %c1 = arith.constant 1 : index
      %c0_10 = arith.constant 0 : index
      %c0_11 = arith.constant 0 : index
      %22 = vector.load %arg6[%c0_9, %c1, %c0_10, %c0_11] : memref<1x3x8x128xf32, #tpu.memory_space<vmem>>, vector<1x1x8x128xf32>
      %23 = vector.shape_cast %22 : vector<1x1x8x128xf32> to vector<8x128xf32>
      %24 = vector.shape_cast %21 : vector<32x128xf32> to vector<4x8x128xf32>
      %cst_12 = arith.constant dense<0.000000e+00> : vector<8x128xf32>
      %25 = vector.multi_reduction <add>, %24, %cst_12 [0] : vector<4x8x128xf32> to vector<8x128xf32>
      %26 = arith.addf %23, %25 : vector<8x128xf32>
      %c0_13 = arith.constant 0 : index
      %c1_14 = arith.constant 1 : index
      %c0_15 = arith.constant 0 : index
      %c0_16 = arith.constant 0 : index
      %27 = vector.load %arg6[%c0_13, %c1_14, %c0_15, %c0_16] : memref<1x3x8x128xf32, #tpu.memory_space<vmem>>, vector<1x1x8x128xf32>
      %28 = vector.shape_cast %27 : vector<1x1x8x128xf32> to vector<8x128xf32>
      %29 = vector.shape_cast %26 : vector<8x128xf32> to vector<1x1x8x128xf32>
      tpu.vector_store %arg6[%c0_13, %c1_14, %c0_15, %c0_16], %29 {strides = array<i32>} : memref<1x3x8x128xf32, #tpu.memory_space<vmem>>, vector<1x1x8x128xf32>,
    } else {
    }
    %c1_i32_4 = arith.constant 1 : i32
    %11 = arith.cmpi slt, %1, %c1_i32_4 : i32
    %12 = arith.extui %11 : i1 to i32
    %c0_i32_5 = arith.constant 0 : i32
    %13 = arith.cmpi ne, %12, %c0_i32_5 : i32
    scf.if %13 {
      %c0 = arith.constant 0 : index
      %c0_8 = arith.constant 0 : index
      %17 = vector.load %arg5[%c0, %c0_8] : memref<8x128xf32, #tpu.memory_space<vmem>>, vector<8x128xf32>
      %18 = arith.mulf %17, %17 : vector<8x128xf32>
      %c0_9 = arith.constant 0 : index
      %c2 = arith.constant 2 : index
      %c0_10 = arith.constant 0 : index
      %c0_11 = arith.constant 0 : index
      %19 = vector.load %arg6[%c0_9, %c2, %c0_10, %c0_11] : memref<1x3x8x128xf32, #tpu.memory_space<vmem>>, vector<1x1x8x128xf32>
      %20 = vector.shape_cast %19 : vector<1x1x8x128xf32> to vector<8x128xf32>
      %21 = vector.shape_cast %18 : vector<8x128xf32> to vector<1x8x128xf32>
      %cst = arith.constant dense<0.000000e+00> : vector<8x128xf32>
      %22 = vector.multi_reduction <add>, %21, %cst [0] : vector<1x8x128xf32> to vector<8x128xf32>
      %23 = arith.addf %20, %22 : vector<8x128xf32>
      %c0_12 = arith.constant 0 : index
      %c2_13 = arith.constant 2 : index
      %c0_14 = arith.constant 0 : index
      %c0_15 = arith.constant 0 : index
      %24 = vector.load %arg6[%c0_12, %c2_13, %c0_14, %c0_15] : memref<1x3x8x128xf32, #tpu.memory_space<vmem>>, vector<1x1x8x128xf32>
      %25 = vector.shape_cast %24 : vector<1x1x8x128xf32> to vector<8x128xf32>
      %26 = vector.shape_cast %23 : vector<8x128xf32> to vector<1x1x8x128xf32>
      tpu.vector_store %arg6[%c0_12, %c2_13, %c0_14, %c0_15], %26 {strides = array<i32>} : memref<1x3x8x128xf32, #tpu.memory_space<vmem>>, vector<1x1x8x128xf32>,
    } else {
    }
    %c1_i32_6 = arith.constant 1 : i32
    %14 = arith.cmpi eq, %1, %c1_i32_6 : i32
    %15 = arith.extui %14 : i1 to i32
    %c0_i32_7 = arith.constant 0 : i32
    %16 = arith.cmpi ne, %15, %c0_i32_7 : i32
    scf.if %16 {
      %c0 = arith.constant 0 : index
      %c0_8 = arith.constant 0 : index
      %17 = vector.load %arg5[%c0, %c0_8] : memref<8x128xf32, #tpu.memory_space<vmem>>, vector<8x128xf32>
      %18 = arith.mulf %17, %17 : vector<8x128xf32>
      %19 = tpu.iota {dimensions = array<i32: 0>} : vector<8x128xi32>
      %c1_i32_9 = arith.constant 1 : i32
      %20 = vector.broadcast %c1_i32_9 : i32 to vector<8x128xi32>
      %21 = arith.cmpi slt, %19, %20 : vector<8x128xi32>
      %cst = arith.constant 0.000000e+00 : f32
      %22 = vector.broadcast %cst : f32 to vector<8x128xf32>
      %23 = arith.select %21, %18, %22 : vector<8x128xi1>, vector<8x128xf32>
      %c0_10 = arith.constant 0 : index
      %c2 = arith.constant 2 : index
      %c0_11 = arith.constant 0 : index
      %c0_12 = arith.constant 0 : index
      %24 = vector.load %arg6[%c0_10, %c2, %c0_11, %c0_12] : memref<1x3x8x128xf32, #tpu.memory_space<vmem>>, vector<1x1x8x128xf32>
      %25 = vector.shape_cast %24 : vector<1x1x8x128xf32> to vector<8x128xf32>
      %26 = vector.shape_cast %23 : vector<8x128xf32> to vector<1x8x128xf32>
      %cst_13 = arith.constant dense<0.000000e+00> : vector<8x128xf32>
      %27 = vector.multi_reduction <add>, %26, %cst_13 [0] : vector<1x8x128xf32> to vector<8x128xf32>
      %28 = arith.addf %25, %27 : vector<8x128xf32>
      %c0_14 = arith.constant 0 : index
      %c2_15 = arith.constant 2 : index
      %c0_16 = arith.constant 0 : index
      %c0_17 = arith.constant 0 : index
      %29 = vector.load %arg6[%c0_14, %c2_15, %c0_16, %c0_17] : memref<1x3x8x128xf32, #tpu.memory_space<vmem>>, vector<1x1x8x128xf32>
      %30 = vector.shape_cast %29 : vector<1x1x8x128xf32> to vector<8x128xf32>
      %31 = vector.shape_cast %28 : vector<8x128xf32> to vector<1x1x8x128xf32>
      tpu.vector_store %arg6[%c0_14, %c2_15, %c0_16, %c0_17], %31 {strides = array<i32>} : memref<1x3x8x128xf32, #tpu.memory_space<vmem>>, vector<1x1x8x128xf32>,
    } else {
    }
    return
  }
  func.func @transform_0(%arg0: i32, %arg1: i32) -> (i32, i32) {
    %c2_i32 = arith.constant 2 : i32
    %0 = arith.muli %arg0, %c2_i32 : i32
    %1 = arith.addi %0, %arg1 : i32
    %c0_i32 = arith.constant 0 : i32
    %2 = arith.minsi %1, %c0_i32 : i32
    %c0_i32_0 = arith.constant 0 : i32
    %c0_i32_1 = arith.constant 0 : i32
    return %2, %c0_i32_0 : i32, i32
  }
  func.func @transform_1(%arg0: i32, %arg1: i32) -> (i32, i32) {
    %c2_i32 = arith.constant 2 : i32
    %0 = arith.muli %arg0, %c2_i32 : i32
    %1 = arith.addi %0, %arg1 : i32
    %c0_i32 = arith.constant 0 : i32
    %2 = arith.minsi %1, %c0_i32 : i32
    %c0_i32_0 = arith.constant 0 : i32
    %c0_i32_1 = arith.constant 0 : i32
    return %2, %c0_i32_0 : i32, i32
  }
  func.func @transform_2(%arg0: i32, %arg1: i32) -> (i32, i32) {
    %c2_i32 = arith.constant 2 : i32
    %0 = arith.muli %arg0, %c2_i32 : i32
    %1 = arith.addi %0, %arg1 : i32
    %c0_i32 = arith.constant 0 : i32
    %2 = arith.minsi %1, %c0_i32 : i32
    %c0_i32_0 = arith.constant 0 : i32
    %c0_i32_1 = arith.constant 0 : i32
    return %2, %c0_i32_0 : i32, i32
  }
  func.func @transform_3(%arg0: i32, %arg1: i32) -> (i32, i32) {
    %c2_i32 = arith.constant 2 : i32
    %0 = arith.muli %arg0, %c2_i32 : i32
    %1 = arith.addi %0, %arg1 : i32
    %c1_i32 = arith.constant 1 : i32
    %2 = arith.minsi %1, %c1_i32 : i32
    %c0_i32 = arith.constant 0 : i32
    %c0_i32_0 = arith.constant 0 : i32
    return %2, %c0_i32 : i32, i32
  }
  func.func @transform_4(%arg0: i32, %arg1: i32) -> (i32, i32, i32, i32) {
    %c0_i32 = arith.constant 0 : i32
    %c0_i32_0 = arith.constant 0 : i32
    %c0_i32_1 = arith.constant 0 : i32
    %c0_i32_2 = arith.constant 0 : i32
    return %arg0, %c0_i32, %c0_i32_0, %c0_i32_1 : i32, i32, i32, i32
  }
}

</mosaic_0001>

<llo_original>
// kernel: _memae_loss.1
$region0: #{_memae_loss.1}
  #allocation0 [shape = 'u32[]', space=smem, size = 0x4, offset = 0x4, fixed_abs, tag = 'smem constant byte address 0x4 - core index']
  #allocation1 [shape = 'u32[144,128]{1,0:T(1,128)}', space=vmem, size = 0x12000, scoped, tag = 'internal scratch']
  %s0 = inlined_call_operand.vmem [shape: f32[16,128], index: 0, kind: input, shape index: {}]
  %s1 = inlined_call_operand.vmem [shape: f32[16,128], index: 1, kind: input, shape index: {}]
  %s2 = inlined_call_operand.vmem [shape: f32[32,128], index: 2, kind: input, shape index: {}]
  %s3 = inlined_call_operand.vmem [shape: f32[9,128], index: 3, kind: input, shape index: {}]
  %s4 = inlined_call_operand.vmem [shape: f32[1,3,8,128], index: 4, kind: output, shape index: {}]
  %s5 = sld [smem:[#allocation0]]
  $region61: #{_memae_loss.1} parent=0
    _
  %s7 = ssub.s32 1, %s5
  %s8 = scalar_select 0, %s7, %s5
  loop: start=0, step=1, limit=4
  $region2: #{_memae_loss.1} parent=0 // loop_pre_header
    _
  $region3: #{_memae_loss.1} parent=0 // loop_header
    %s10 = sphi 0, %s14
    %p11 = scmp.ge.s32.totalorder %s10, 4
    %s17 = sphi 0, %s29
    %s18 = sphi 0, %s25
    %s19 = sphi 0, %s17
    %s20 = sphi 0, %s18
    %s21 = sphi 0, %s19
    %s22 = sphi 0, %s20
    %s40 = sphi 0, %s42
    %s43 = sphi 0, %s40
    %s44 = sphi 0, %s43
    %s60 = sphi 0, %s44
    %s74 = sphi 0, %s76
    %s77 = sphi 0, %s74
    %s78 = sphi 0, %s77
    %s94 = sphi 0, %s78
    %s108 = sphi 0, %s110
    %s111 = sphi 0, %s108
    %s112 = sphi 0, %s111
    %s128 = sphi 0, %s112
    %s142 = sphi 0, %s144
    %s145 = sphi 0, %s142
    %s146 = sphi 0, %s145
    %s162 = sphi 0, %s146
    %s168 = sphi 0, %s170
    %s171 = sphi 0, %s168
    %s172 = sphi 0, %s171
    %s188 = sphi 0, %s172
  $region4: #{_memae_loss.1} parent=0 // loop_header_branch
    %13 = sbr.rel (%p11) target = $region8
  $region5: #{_memae_loss.1} parent=0 // loop_body
    %s15 = ssub.s32 %s10, 1
    %s16 = ssub.s32 %s10, 2
    %s23 = sadd.s32 1, %s18
    %p24 = scmp.ge.s32.totalorder %s23, 2
    %s25 = scalar_select %p24, 0, %s23
    %s26 = sadd.s32 1, %s17
    %s27 = scalar_select %p24, %s26, %s17
    %p28 = scmp.ge.s32.totalorder %s27, 1
    %s29 = scalar_select %p28, 0, %s27
    %s30 = smul.u32 %s17, 2
    %s31 = sadd.s32 %s30, %s18
    %p32 = scmp.lt.s32.totalorder %s31, 0
    %s33 = scalar_select %p32, %s31, 0
    %s34 = smul.u32 %s29, 2
    %s35 = sadd.s32 %s34, %s25
    %p36 = scmp.lt.s32.totalorder %s35, 0
    %s37 = scalar_select %p36, %s35, 0
    %s38 = ssub.s32 %s33, %s37
    %p39 = scmp.eq.s32.totalorder %s38, 0
    %s41 = sadd.s32 %s40, 1
    %s42 = scalar_select %p39, %s40, %s41
    %p45 = pneg %p39
    %p46 = scmp.eq.s32.totalorder %s10, 1
    %p47 = por %p45, %p46
    %p48 = scmp.ne.s32.totalorder %s40, %s43
    %p49 = scmp.eq.s32.totalorder %s10, 0
    %p50 = por %p48, %p49
    %p51 = scmp.ne.s32.totalorder %s40, %s43
    %p52 = scmp.eq.s32.totalorder %s15, 1
    %p53 = por %p51, %p52
    %p54 = scmp.ne.s32.totalorder %s43, %s44
    %p55 = scmp.eq.s32.totalorder %s15, 0
    %p56 = por %p54, %p55
    %p57 = scmp.ne.s32.totalorder %s43, %s44
    %p58 = scmp.eq.s32.totalorder %s16, 1
    %p59 = por %p57, %p58
    %p61 = scmp.ne.s32.totalorder %s44, %s60
    %p62 = scmp.eq.s32.totalorder %s16, 0
    %p63 = por %p61, %p62
    %s64 = smul.u32 %s17, 2
    %s65 = sadd.s32 %s64, %s18
    %p66 = scmp.lt.s32.totalorder %s65, 0
    %s67 = scalar_select %p66, %s65, 0
    %s68 = smul.u32 %s29, 2
    %s69 = sadd.s32 %s68, %s25
    %p70 = scmp.lt.s32.totalorder %s69, 0
    %s71 = scalar_select %p70, %s69, 0
    %s72 = ssub.s32 %s67, %s71
    %p73 = scmp.eq.s32.totalorder %s72, 0
    %s75 = sadd.s32 %s74, 1
    %s76 = scalar_select %p73, %s74, %s75
    %p79 = pneg %p73
    %p80 = scmp.eq.s32.totalorder %s10, 1
    %p81 = por %p79, %p80
    %p82 = scmp.ne.s32.totalorder %s74, %s77
    %p83 = scmp.eq.s32.totalorder %s10, 0
    %p84 = por %p82, %p83
    %p85 = scmp.ne.s32.totalorder %s74, %s77
    %p86 = scmp.eq.s32.totalorder %s15, 1
    %p87 = por %p85, %p86
    %p88 = scmp.ne.s32.totalorder %s77, %s78
    %p89 = scmp.eq.s32.totalorder %s15, 0
    %p90 = por %p88, %p89
    %p91 = scmp.ne.s32.totalorder %s77, %s78
    %p92 = scmp.eq.s32.totalorder %s16, 1
    %p93 = por %p91, %p92
    %p95 = scmp.ne.s32.totalorder %s78, %s94
    %p96 = scmp.eq.s32.totalorder %s16, 0
    %p97 = por %p95, %p96
    %s98 = smul.u32 %s17, 2
    %s99 = sadd.s32 %s98, %s18
    %p100 = scmp.lt.s32.totalorder %s99, 0
    %s101 = scalar_select %p100, %s99, 0
    %s102 = smul.u32 %s29, 2
    %s103 = sadd.s32 %s102, %s25
    %p104 = scmp.lt.s32.totalorder %s103, 0
    %s105 = scalar_select %p104, %s103, 0
    %s106 = ssub.s32 %s101, %s105
    %p107 = scmp.eq.s32.totalorder %s106, 0
    %s109 = sadd.s32 %s108, 1
    %s110 = scalar_select %p107, %s108, %s109
    %p113 = pneg %p107
    %p114 = scmp.eq.s32.totalorder %s10, 1
    %p115 = por %p113, %p114
    %p116 = scmp.ne.s32.totalorder %s108, %s111
    %p117 = scmp.eq.s32.totalorder %s10, 0
    %p118 = por %p116, %p117
    %p119 = scmp.ne.s32.totalorder %s108, %s111
    %p120 = scmp.eq.s32.totalorder %s15, 1
    %p121 = por %p119, %p120
    %p122 = scmp.ne.s32.totalorder %s111, %s112
    %p123 = scmp.eq.s32.totalorder %s15, 0
    %p124 = por %p122, %p123
    %p125 = scmp.ne.s32.totalorder %s111, %s112
    %p126 = scmp.eq.s32.totalorder %s16, 1
    %p127 = por %p125, %p126
    %p129 = scmp.ne.s32.totalorder %s112, %s128
    %p130 = scmp.eq.s32.totalorder %s16, 0
    %p131 = por %p129, %p130
    %s132 = smul.u32 %s17, 2
    %s133 = sadd.s32 %s132, %s18
    %p134 = scmp.lt.s32.totalorder %s133, 1
    %s135 = scalar_select %p134, %s133, 1
    %s136 = smul.u32 %s29, 2
    %s137 = sadd.s32 %s136, %s25
    %p138 = scmp.lt.s32.totalorder %s137, 1
    %s139 = scalar_select %p138, %s137, 1
    %s140 = ssub.s32 %s135, %s139
    %p141 = scmp.eq.s32.totalorder %s140, 0
    %s143 = sadd.s32 %s142, 1
    %s144 = scalar_select %p141, %s142, %s143
    %p147 = pneg %p141
    %p148 = scmp.eq.s32.totalorder %s10, 1
    %p149 = por %p147, %p148
    %p150 = scmp.ne.s32.totalorder %s142, %s145
    %p151 = scmp.eq.s32.totalorder %s10, 0
    %p152 = por %p150, %p151
    %p153 = scmp.ne.s32.totalorder %s142, %s145
    %p154 = scmp.eq.s32.totalorder %s15, 1
    %p155 = por %p153, %p154
    %p156 = scmp.ne.s32.totalorder %s145, %s146
    %p157 = scmp.eq.s32.totalorder %s15, 0
    %p158 = por %p156, %p157
    %p159 = scmp.ne.s32.totalorder %s145, %s146
    %p160 = scmp.eq.s32.totalorder %s16, 1
    %p161 = por %p159, %p160
    %p163 = scmp.ne.s32.totalorder %s146, %s162
    %p164 = scmp.eq.s32.totalorder %s16, 0
    %p165 = por %p163, %p164
    %s166 = ssub.s32 %s17, %s29
    %p167 = scmp.eq.s32.totalorder %s166, 0
    %s169 = sadd.s32 %s168, 1
    %s170 = scalar_select %p167, %s168, %s169
    %p173 = pneg %p167
    %p174 = scmp.eq.s32.totalorder %s10, 1
    %p175 = por %p173, %p174
    %p176 = scmp.ne.s32.totalorder %s168, %s171
    %p177 = scmp.eq.s32.totalorder %s10, 0
    %p178 = por %p176, %p177
    %p179 = scmp.ne.s32.totalorder %s168, %s171
    %p180 = scmp.eq.s32.totalorder %s15, 1
    %p181 = por %p179, %p180
    %p182 = scmp.ne.s32.totalorder %s171, %s172
    %p183 = scmp.eq.s32.totalorder %s15, 0
    %p184 = por %p182, %p183
    %p185 = scmp.ne.s32.totalorder %s171, %s172
    %p186 = scmp.eq.s32.totalorder %s16, 1
    %p187 = por %p185, %p186
    %p189 = scmp.ne.s32.totalorder %s172, %s188
    %p190 = scmp.eq.s32.totalorder %s16, 0
    %p191 = por %p189, %p190
    %p192 = scmp.le.s32.totalorder 1, %s10
    %p193 = scmp.lt.s32.totalorder %s10, 3
    %p194 = pnand %p192, %p193
    %p195 = pneg %p194
    // Predicated region
    $region9: #{_memae_loss.1} parent=5 // pred_check
      _
    $region10: #{_memae_loss.1} parent=5 // pred_check_branch
      %197 = sbr.rel (%p194) target = $region12
    $region11: #{_memae_loss.1} parent=5 // pred_region
      %s198 = ssub.s32 %s10, 1
    $region12: #{_memae_loss.1} parent=5 // pred_fallthru
      _
    %p199 = scmp.lt.s32.totalorder %s10, 2
    // Predicated region
    $region13: #{_memae_loss.1} parent=5 // pred_check
      %p200 = pneg %p199
    $region14: #{_memae_loss.1} parent=5 // pred_check_branch
      %202 = sbr.rel (%p200) target = $region16
    $region15: #{_memae_loss.1} parent=5 // pred_region
      // Predicated region
      $region17: #{_memae_loss.1} parent=15 // pred_check
        %p203 = pneg %p50
      $region18: #{_memae_loss.1} parent=15 // pred_check_branch
        %205 = sbr.rel (%p203) target = $region20
      $region19: #{_memae_loss.1} parent=15 // pred_region
        %s206 = smul.u32 %s17, 2
        %s207 = sadd.s32 %s206, %s18
        %p208 = scmp.lt.s32.totalorder %s207, 0
        %s209 = scalar_select %p208, %s207, 0
        %s210 = smul.u32 2, %s209
        %p211 = scmp.lt.s32.totalorder %s210, 1
        %s212 = scalar_select %p211, %s210, 1
        %s213 = smul.addr %s212, 8
        %s214 = scalar_lea.vmem %s0, %s213
        %s215 = smul.u32 %s17, 2
        %s216 = sadd.s32 %s215, %s18
        %p217 = scmp.lt.s32.totalorder %s216, 0
        %s218 = scalar_select %p217, %s216, 0
        %s219 = smul.u32 2, %s218
      $region20: #{_memae_loss.1} parent=15 // pred_fallthru
        _
      // Predicated region
      $region21: #{_memae_loss.1} parent=15 // pred_check
        %p220 = pneg %p84
      $region22: #{_memae_loss.1} parent=15 // pred_check_branch
        %222 = sbr.rel (%p220) target = $region24
      $region23: #{_memae_loss.1} parent=15 // pred_region
        %s223 = smul.u32 %s17, 2
        %s224 = sadd.s32 %s223, %s18
        %p225 = scmp.lt.s32.totalorder %s224, 0
        %s226 = scalar_select %p225, %s224, 0
        %s227 = smul.u32 2, %s226
        %p228 = scmp.lt.s32.totalorder %s227, 1
        %s229 = scalar_select %p228, %s227, 1
        %s230 = smul.addr %s229, 8
        %s231 = scalar_lea.vmem %s1, %s230
        %s232 = smul.u32 %s17, 2
        %s233 = sadd.s32 %s232, %s18
        %p234 = scmp.lt.s32.totalorder %s233, 0
        %s235 = scalar_select %p234, %s233, 0
        %s236 = smul.u32 2, %s235
      $region24: #{_memae_loss.1} parent=15 // pred_fallthru
        _
      // Predicated region
      $region25: #{_memae_loss.1} parent=15 // pred_check
        %p237 = pneg %p118
      $region26: #{_memae_loss.1} parent=15 // pred_check_branch
        %239 = sbr.rel (%p237) target = $region28
      $region27: #{_memae_loss.1} parent=15 // pred_region
        %s240 = smul.u32 %s17, 2
        %s241 = sadd.s32 %s240, %s18
        %p242 = scmp.lt.s32.totalorder %s241, 0
        %s243 = scalar_select %p242, %s241, 0
        %s244 = smul.u32 4, %s243
        %p245 = scmp.lt.s32.totalorder %s244, 3
        %s246 = scalar_select %p245, %s244, 3
        %s247 = smul.addr %s246, 8
        %s248 = scalar_lea.vmem %s2, %s247
        %s249 = smul.u32 %s17, 2
        %s250 = sadd.s32 %s249, %s18
        %p251 = scmp.lt.s32.totalorder %s250, 0
        %s252 = scalar_select %p251, %s250, 0
        %s253 = smul.u32 4, %s252
      $region28: #{_memae_loss.1} parent=15 // pred_fallthru
        _
      // Predicated region
      $region29: #{_memae_loss.1} parent=15 // pred_check
        %p254 = pneg %p152
      $region30: #{_memae_loss.1} parent=15 // pred_check_branch
        %256 = sbr.rel (%p254) target = $region32
      $region31: #{_memae_loss.1} parent=15 // pred_region
        %s257 = smul.u32 %s17, 2
        %s258 = sadd.s32 %s257, %s18
        %p259 = scmp.lt.s32.totalorder %s258, 1
        %s260 = scalar_select %p259, %s258, 1
        %p261 = scmp.lt.s32.totalorder %s260, 1
        %s262 = scalar_select %p261, %s260, 1
        %s263 = smul.addr %s262, 8
        %s264 = scalar_lea.vmem %s3, %s263
        %s265 = smul.u32 %s17, 2
        %s266 = sadd.s32 %s265, %s18
        %p267 = scmp.lt.s32.totalorder %s266, 1
        %s268 = scalar_select %p267, %s266, 1
      $region32: #{_memae_loss.1} parent=15 // pred_fallthru
        _
    $region16: #{_memae_loss.1} parent=5 // pred_fallthru
      _
    %p269 = scmp.le.s32.totalorder 1, %s10
    %p270 = scmp.lt.s32.totalorder %s10, 3
    %p271 = pnand %p269, %p270
    %p272 = pneg %p271
    // Predicated region
    $region33: #{_memae_loss.1} parent=5 // pred_check
      _
    $region34: #{_memae_loss.1} parent=5 // pred_check_branch
      %274 = sbr.rel (%p271) target = $region36
    $region35: #{_memae_loss.1} parent=5 // pred_region
      %s275 = ssub.s32 %s10, 1
      %s276 = smul.u32 %s19, 2
      %s277 = sadd.s32 %s276, %s20
      %p278 = scmp.lt.s32.totalorder %s277, 0
      %s279 = scalar_select %p278, %s277, 0
      %s280 = smul.u32 2, %s279
      %p281 = scmp.lt.s32.totalorder %s280, 1
      %s282 = scalar_select %p281, %s280, 1
      %s283 = smul.addr %s282, 8
      %s284 = scalar_lea.vmem %s0, %s283
      %p285 = pneg %p56
      %p286 = pneg %p53
      %s287 = smul.u32 %s19, 2
      %s288 = sadd.s32 %s287, %s20
      %p289 = scmp.lt.s32.totalorder %s288, 0
      %s290 = scalar_select %p289, %s288, 0
      %s291 = smul.u32 2, %s290
      %p292 = scmp.lt.s32.totalorder %s291, 1
      %s293 = scalar_select %p292, %s291, 1
      %s294 = smul.addr %s293, 8
      %s295 = scalar_lea.vmem %s1, %s294
      %p296 = pneg %p90
      %p297 = pneg %p87
      %s298 = smul.u32 %s19, 2
      %s299 = sadd.s32 %s298, %s20
      %p300 = scmp.lt.s32.totalorder %s299, 0
      %s301 = scalar_select %p300, %s299, 0
      %s302 = smul.u32 4, %s301
      %p303 = scmp.lt.s32.totalorder %s302, 3
      %s304 = scalar_select %p303, %s302, 3
      %s305 = smul.addr %s304, 8
      %s306 = scalar_lea.vmem %s2, %s305
      %p307 = pneg %p124
      %p308 = pneg %p121
      %s309 = smul.u32 %s19, 2
      %s310 = sadd.s32 %s309, %s20
      %p311 = scmp.lt.s32.totalorder %s310, 1
      %s312 = scalar_select %p311, %s310, 1
      %p313 = scmp.lt.s32.totalorder %s312, 1
      %s314 = scalar_select %p313, %s312, 1
      %s315 = smul.addr %s314, 8
      %s316 = scalar_lea.vmem %s3, %s315
      %p317 = pneg %p158
      %p318 = pneg %p155
      %p319 = pneg %p184
      %p320 = pneg %p181
      %p321 = scmp.lt.s32.totalorder %s19, 0
      %s322 = scalar_select %p321, %s19, 0
      %s323 = smul.addr %s322, 3
      %s324 = smul.addr %s323, 8
      %s325 = scalar_lea.vmem %s4, %s324
      %s326 = smul.u32 %s19, 2
      %s327 = sadd.s32 %s326, %s20
      %p328 = scmp.lt.s32.totalorder %s327, 0
      %s329 = scalar_select %p328, %s327, 0
      %s330 = smul.u32 2, %s329
      %p331 = scmp.lt.s32.totalorder %s330, 1
      %s332 = scalar_select %p331, %s330, 1
      %s333 = smul.addr %s332, 8
      %s334 = scalar_lea.vmem %s0, %s333
      %s335 = smul.u32 %s19, 2
      %s336 = sadd.s32 %s335, %s20
      %p337 = scmp.lt.s32.totalorder %s336, 0
      %s338 = scalar_select %p337, %s336, 0
      %s339 = smul.u32 2, %s338
      %s340 = smul.u32 %s19, 2
      %s341 = sadd.s32 %s340, %s20
      %p342 = scmp.lt.s32.totalorder %s341, 0
      %s343 = scalar_select %p342, %s341, 0
      %s344 = smul.u32 2, %s343
      %p345 = scmp.lt.s32.totalorder %s344, 1
      %s346 = scalar_select %p345, %s344, 1
      %s347 = smul.addr %s346, 8
      %s348 = scalar_lea.vmem %s1, %s347
      %s349 = smul.u32 %s19, 2
      %s350 = sadd.s32 %s349, %s20
      %p351 = scmp.lt.s32.totalorder %s350, 0
      %s352 = scalar_select %p351, %s350, 0
      %s353 = smul.u32 2, %s352
      %s354 = smul.u32 %s19, 2
      %s355 = sadd.s32 %s354, %s20
      %p356 = scmp.lt.s32.totalorder %s355, 0
      %s357 = scalar_select %p356, %s355, 0
      %s358 = smul.u32 4, %s357
      %p359 = scmp.lt.s32.totalorder %s358, 3
      %s360 = scalar_select %p359, %s358, 3
      %s361 = smul.addr %s360, 8
      %s362 = scalar_lea.vmem %s2, %s361
      %s363 = smul.u32 %s19, 2
      %s364 = sadd.s32 %s363, %s20
      %p365 = scmp.lt.s32.totalorder %s364, 0
      %s366 = scalar_select %p365, %s364, 0
      %s367 = smul.u32 4, %s366
      %s368 = smul.u32 %s19, 2
      %s369 = sadd.s32 %s368, %s20
      %p370 = scmp.lt.s32.totalorder %s369, 1
      %s371 = scalar_select %p370, %s369, 1
      %p372 = scmp.lt.s32.totalorder %s371, 1
      %s373 = scalar_select %p372, %s371, 1
      %s374 = smul.addr %s373, 8
      %s375 = scalar_lea.vmem %s3, %s374
      %s376 = smul.u32 %s19, 2
      %s377 = sadd.s32 %s376, %s20
      %p378 = scmp.lt.s32.totalorder %s377, 1
      %s379 = scalar_select %p378, %s377, 1
      %p380 = scmp.lt.s32.totalorder %s19, 0
      %s381 = scalar_select %p380, %s19, 0
      %s382 = smul.addr %s381, 3
      %s383 = smul.addr %s382, 8
      %s384 = scalar_lea.vmem %s4, %s383
      %s385 = smul.u32 %s19, 2
      %s386 = sadd.s32 %s385, %s20
      %p387 = scmp.eq.s32.totalorder %s20, 0
      // Predicated region
      $region37: #{_memae_loss.1} parent=35 // pred_check
        %p388 = pneg %p387
      $region38: #{_memae_loss.1} parent=35 // pred_check_branch
        %390 = sbr.rel (%p388) target = $region40
      $region39: #{_memae_loss.1} parent=35 // pred_region
        %391 = vst [vmem:[%s384] sm:$0xff] 0.0
        %392 = vst [vmem:[%s384 + $0x8] sm:$0xff] 0.0
        %393 = vst [vmem:[%s384 + $0x10] sm:$0xff] 0.0
      $region40: #{_memae_loss.1} parent=35 // pred_fallthru
        _
      %p394 = scmp.lt.s32.totalorder %s386, 1
      // Predicated region
      $region41: #{_memae_loss.1} parent=35 // pred_check
        %p395 = pneg %p394
      $region42: #{_memae_loss.1} parent=35 // pred_check_branch
        %397 = sbr.rel (%p395) target = $region44
      $region43: #{_memae_loss.1} parent=35 // pred_region
        %v398 = vld [vmem:[%s334] sm:$0xff]
        %v399 = vld [vmem:[%s334 + $0x8] sm:$0xff]
        %v400 = vld [vmem:[%s348] sm:$0xff]
        %v401 = vld [vmem:[%s348 + $0x8] sm:$0xff]
        %v402 = vsub.f32 %v398, %v400
        %v403 = vsub.f32 %v399, %v401
        %v404 = vmul.f32 %v402, %v402
        %v405 = vmul.f32 %v403, %v403
        %v406 = vld [vmem:[%s384] sm:$0xff]
        %v407 = vadd.f32 %v404, %v405
        %v408 = vadd.f32 %v406, %v407
        %409 = vst [vmem:[%s384] sm:$0xff] %v408
        %v410 = vld [vmem:[%s362] sm:$0xff]
        %v411 = vld [vmem:[%s362 + $0x8] sm:$0xff]
        %v412 = vld [vmem:[%s362 + $0x10] sm:$0xff]
        %v413 = vld [vmem:[%s362 + $0x18] sm:$0xff]
        %v414 = vadd.f32 %v410, 1e-12
        %v415 = vadd.f32 %v411, 1e-12
        %v416 = vadd.f32 %v412, 1e-12
        %v417 = vadd.f32 %v413, 1e-12
        %v418 = vlog2.pop %v414
        %v419 = vmul.f32 %v418, 0.6931472
        %v420 = vlog2.pop %v415
        %v421 = vmul.f32 %v420, 0.6931472
        %v422 = vlog2.pop %v416
        %v423 = vmul.f32 %v422, 0.6931472
        %v424 = vlog2.pop %v417
        %v425 = vmul.f32 %v424, 0.6931472
        %v426 = vmul.f32 %v410, %v419
        %v427 = vmul.f32 %v411, %v421
        %v428 = vmul.f32 %v412, %v423
        %v429 = vmul.f32 %v413, %v425
        %s430 = scalar_lea.vmem %s384, 8
        %v431 = vld [vmem:[%s430] sm:$0xff]
        %v432 = vadd.f32 %v426, %v427
        %v433 = vadd.f32 %v432, %v428
        %v434 = vadd.f32 %v433, %v429
        %v435 = vadd.f32 %v431, %v434
        %436 = vst [vmem:[%s430] sm:$0xff] %v435
        %v437 = vld [vmem:[%s375] sm:$0xff]
        %v438 = vmul.f32 %v437, %v437
        %s439 = scalar_lea.vmem %s384, 16
        %v440 = vld [vmem:[%s439] sm:$0xff]
        %v441 = vadd.f32 %v438, 0.0
        %v442 = vadd.f32 %v440, %v441
        %443 = vst [vmem:[%s439] sm:$0xff] %v442
      $region44: #{_memae_loss.1} parent=35 // pred_fallthru
        _
      %p444 = scmp.eq.s32.totalorder %s386, 1
      // Predicated region
      $region45: #{_memae_loss.1} parent=35 // pred_check
        %p445 = pneg %p444
      $region46: #{_memae_loss.1} parent=35 // pred_check_branch
        %447 = sbr.rel (%p445) target = $region48
      $region47: #{_memae_loss.1} parent=35 // pred_region
        %v448 = vld [vmem:[%s375] sm:$0xff]
        %v449 = vmul.f32 %v448, %v448
        %v450 = vlaneseq
        %v451 = vshrl.u32 %v450, 7
        %vm452 = vcmp.lt.s32.totalorder %v451, 1
        %v453 = vsel %vm452, %v449, 0.0
        %s454 = scalar_lea.vmem %s384, 16
        %v455 = vld [vmem:[%s454] sm:$0xff]
        %v456 = vadd.f32 %v453, 0.0
        %v457 = vadd.f32 %v455, %v456
        %458 = vst [vmem:[%s454] sm:$0xff] %v457
      $region48: #{_memae_loss.1} parent=35 // pred_fallthru
        _
      %p459 = scmp.lt.s32.totalorder %s19, 0
      %s460 = scalar_select %p459, %s19, 0
      %s461 = smul.addr %s460, 3
      %s462 = smul.addr %s461, 8
      %s463 = scalar_lea.vmem %s4, %s462
      // Predicated region
      $region49: #{_memae_loss.1} parent=35 // pred_check
        %p464 = pneg %p181
      $region50: #{_memae_loss.1} parent=35 // pred_check_branch
        %466 = sbr.rel (%p464) target = $region52
      $region51: #{_memae_loss.1} parent=35 // pred_region
        _
      $region52: #{_memae_loss.1} parent=35 // pred_fallthru
        _
      // Predicated region
      $region53: #{_memae_loss.1} parent=35 // pred_check
        %p467 = pneg %p181
      $region54: #{_memae_loss.1} parent=35 // pred_check_branch
        %469 = sbr.rel (%p467) target = $region56
      $region55: #{_memae_loss.1} parent=35 // pred_region
        %p470 = scmp.lt.s32.totalorder %s19, 0
        %s471 = scalar_select %p470, %s19, 0
        %s472 = smul.addr %s471, 3
        %s473 = smul.addr %s472, 8
        %s474 = scalar_lea.vmem %s4, %s473
      $region56: #{_memae_loss.1} parent=35 // pred_fallthru
        _
    $region36: #{_memae_loss.1} parent=5 // pred_fallthru
      _
    %p475 = scmp.le.s32.totalorder 2, %s10
    // Predicated region
    $region57: #{_memae_loss.1} parent=5 // pred_check
      %p476 = pneg %p475
    $region58: #{_memae_loss.1} parent=5 // pred_check_branch
      %478 = sbr.rel (%p476) target = $region60
    $region59: #{_memae_loss.1} parent=5 // pred_region
      %s479 = ssub.s32 %s10, 2
    $region60: #{_memae_loss.1} parent=5 // pred_fallthru
      _
  $region6: #{_memae_loss.1} parent=0 // loop_footer
    %s14 = sadd.s32 1, %s10
  $region7: #{_memae_loss.1} parent=0 // loop_footer_branch
    %9 = sbr.rel target = $region3
  $region8: #{_memae_loss.1} parent=0 // loop_exit
    _

</llo_original>
